<compile_context>
chip_gen: v6e
topology: v6e:2x2x1
jax: 0.10.0
libtpu: 0.0.40
codegen_flags: <defaults>
</compile_context>

<pallas_src>
import functools

import jax
import jax.numpy as jnp
from jax import lax
from jax.experimental import pallas as pl
from jax.experimental.pallas import tpu as pltpu


def _round_up(x, m):
    return (x + m - 1) // m * m


def _cdiv(a, b):
    return (a + b - 1) // b


# ----------------------------------------------------------------------------
# Fused kernel: trunk (fc1->relu->fc2->relu) + packed heads, narrow output.
#   out[:,          :  n_act] = logits (discrete head, identity)
#   out[:,   n_act  : 2n_act] = tanh(mu head)
#   out[:, 2*n_act  : 3n_act] = softplus(var head)   (stable form)
# ----------------------------------------------------------------------------
def pg_actor_kernel(x_ref, w1_ref, b1_ref, w2_ref, b2_ref, wh_ref, bh_ref,
                    out_ref, *, n_act):
    x = x_ref[...]                                    # bf16 (tb, obs_dim)
    h1 = jnp.dot(x, w1_ref[...], preferred_element_type=jnp.float32) + b1_ref[...]
    h1 = jnp.maximum(h1, 0.0).astype(w2_ref.dtype)    # relu, back to bf16 for MXU
    h2 = jnp.dot(h1, w2_ref[...], preferred_element_type=jnp.float32) + b2_ref[...]
    h2 = jnp.maximum(h2, 0.0).astype(wh_ref.dtype)

    # Single MXU pass over all three heads (packed column-wise).
    y = jnp.dot(h2, wh_ref[...], preferred_element_type=jnp.float32) + bh_ref[...]

    # Per-lane activation selection (no lane slicing inside the kernel).
    lane = lax.broadcasted_iota(jnp.int32, y.shape, 1)
    is_mu = (lane >= n_act) & (lane < 2 * n_act)
    is_var = lane >= 2 * n_act

    # Numerically stable softplus: max(x, 0) + log1p(exp(-|x|)).
    softplus = jnp.maximum(y, 0.0) + jnp.log1p(jnp.exp(-jnp.abs(y)))
    out = jnp.where(is_mu, jnp.tanh(y), jnp.where(is_var, softplus, y))
    out_ref[...] = out.astype(out_ref.dtype)


# ----------------------------------------------------------------------------
# Wrapper: batch-tiled grid with padding-minimizing tile choice,
# VMEM-resident weights, narrow (3*n_act) f32 output.
# ----------------------------------------------------------------------------
def pg_actor_fused(x, params, *, block_b=2048, min_dual_core_batch=64):
    B, obs_dim = x.shape
    n_act = params["n_act"]
    n_out = 3 * n_act
    w1, b1, w2, b2 = params["w1"], params["b1"], params["w2"], params["b2"]
    wh, bh = params["wh"], params["bh"]
    compute_dtype = w1.dtype

    # Tile choice: minimize padding; force >=2 grid steps for non-tiny B so
    # both v7x TensorCores are used (the batch axis is marked "parallel").
    steps = _cdiv(B, block_b)
    if B >= min_dual_core_batch:
        steps = max(steps, 2)
    tb = min(block_b, _round_up(_cdiv(B, steps), 8))
    b_pad = tb * _cdiv(B, tb)

    x = x.astype(compute_dtype)
    if b_pad != B:
        x = jnp.pad(x, ((0, b_pad - B), (0, 0)))
    grid = (b_pad // tb,)

    kernel = functools.partial(pg_actor_kernel, n_act=n_act)
    out = pl.pallas_call(
        kernel,
        out_shape=jax.ShapeDtypeStruct((b_pad, n_out), jnp.float32),
        grid_spec=pltpu.PrefetchScalarGridSpec(
            num_scalar_prefetch=0,
            grid=grid,
            in_specs=[
                pl.BlockSpec((tb, obs_dim), lambda i: (i, 0)),   # x: batch-tiled
                pl.BlockSpec(w1.shape, lambda i: (0, 0)),        # weights resident
                pl.BlockSpec(b1.shape, lambda i: (0, 0)),
                pl.BlockSpec(w2.shape, lambda i: (0, 0)),
                pl.BlockSpec(b2.shape, lambda i: (0, 0)),
                pl.BlockSpec(wh.shape, lambda i: (0, 0)),
                pl.BlockSpec(bh.shape, lambda i: (0, 0)),
            ],
            out_specs=pl.BlockSpec((tb, n_out), lambda i: (i, 0)),
        ),
        compiler_params=pltpu.CompilerParams(
            dimension_semantics=("parallel",)),
    )(x, w1, b1, w2, b2, wh, bh)

    # Packed (B, 3*n_act): [logits | tanh(mu) | softplus(var)].
    return out[:B]


# Branch wrappers matching the PyTorch module's two forward variants
# (gym.spaces.Discrete vs. continuous) -- slices on the tiny packed output.
def pg_actor_discrete(x, params):
    n_act = params["n_act"]
    return pg_actor_fused(x, params)[:, :n_act]


def pg_actor_continuous(x, params):
    n_act = params["n_act"]
    out = pg_actor_fused(x, params)
    return out[:, n_act:2 * n_act], out[:, 2 * n_act:3 * n_act]


# ----------------------------------------------------------------------------
# Deterministic parameter init (PyTorch nn.Linear-style uniform bounds).
# Weights stored pre-transposed (in_features, out_features); biases (1, out).
# Head weights packed column-wise into one (hidden, 3*n_act) matrix.
# Matmul weights are stored in bfloat16; biases (and accumulation) stay f32.
# ----------------------------------------------------------------------------
def _linear_params(key, in_f, out_f):
    kw, kb = jax.random.split(key)
    bound = 1.0 / jnp.sqrt(in_f)
    w = jax.random.uniform(kw, (in_f, out_f), jnp.float32, -bound, bound)
    b = jax.random.uniform(kb, (1, out_f), jnp.float32, -bound, bound)
    return w, b


def make_params(key, obs_dim, hiddens, n_actions, compute_dtype=jnp.bfloat16):
    k1, k2, k3, k4, k5 = jax.random.split(key, 5)
    w1, b1 = _linear_params(k1, obs_dim, hiddens[0])
    w2, b2 = _linear_params(k2, hiddens[0], hiddens[1])
    wo, bo = _linear_params(k3, hiddens[1], n_actions)      # discrete head
    wmu, bmu = _linear_params(k4, hiddens[1], n_actions)    # continuous heads
    wv, bv = _linear_params(k5, hiddens[1], n_actions)

    wh = jnp.concatenate([wo, wmu, wv], axis=1)              # (hidden, 3*n_act)
    bh = jnp.concatenate([bo, bmu, bv], axis=1)              # (1, 3*n_act)

    return dict(
        # kernel-side params (bf16 matmul weights, f32 biases)
        w1=w1.astype(compute_dtype), b1=b1,
        w2=w2.astype(compute_dtype), b2=b2,
        wh=wh.astype(compute_dtype), bh=bh,
        # f32 masters for the pure-JAX reference
        w1_f32=w1, w2_f32=w2,
        wo=wo, bo=bo, wmu=wmu, bmu=bmu, wv=wv, bv=bv,
        n_act=n_actions)


# Pure-JAX f32 reference for the correctness check.
def _ref_forward(x, p):
    h1 = jnp.maximum(x @ p["w1_f32"] + p["b1"], 0.0)
    h2 = jnp.maximum(h1 @ p["w2_f32"] + p["b2"], 0.0)
    logits = h2 @ p["wo"] + p["bo"]
    mu = jnp.tanh(h2 @ p["wmu"] + p["bmu"])
    zv = h2 @ p["wv"] + p["bv"]
    var = jnp.maximum(zv, 0.0) + jnp.log1p(jnp.exp(-jnp.abs(zv)))  # stable softplus
    return logits, mu, var


def _check(x, params, atol=3e-2, rtol=2e-2):
    n_act = params["n_act"]
    out = pg_actor_fused(x, params)
    jax.block_until_ready(out)
    logits = out[:, :n_act]
    mu = out[:, n_act:2 * n_act]
    var = out[:, 2 * n_act:3 * n_act]
    logits_ref, mu_ref, var_ref = _ref_forward(x, params)
    assert jnp.allclose(logits, logits_ref, atol=atol, rtol=rtol), "logits mismatch"
    assert jnp.allclose(mu, mu_ref, atol=atol, rtol=rtol), "mu mismatch"
    assert jnp.allclose(var, var_ref, atol=atol, rtol=rtol), "var mismatch"


if __name__ == "__main__":
    key = jax.random.PRNGKey(0)
    k_x, k_x2, k_p = jax.random.split(key, 3)

    obs_dim, hiddens, n_actions = 16, (32, 32), 4
    params = make_params(k_p, obs_dim, hiddens, n_actions)

    # Small batch: single grid step path.
    x_small = jax.random.normal(k_x, (8, obs_dim), jnp.float32)
    _check(x_small, params)

    # Larger batch: exercises the >=2-step grid + padding-minimizing tile.
    x_large = jax.random.normal(k_x2, (200, obs_dim), jnp.float32)
    _check(x_large, params)

    # Branch wrappers (same fused kernel underneath).
    logits_d = pg_actor_discrete(x_small, params)
    mu_c, var_c = pg_actor_continuous(x_small, params)
    jax.block_until_ready((logits_d, mu_c, var_c))
    logits_ref, mu_ref, var_ref = _ref_forward(x_small, params)
    assert jnp.allclose(logits_d, logits_ref, atol=3e-2, rtol=2e-2), "discrete wrapper mismatch"
    assert jnp.allclose(mu_c, mu_ref, atol=3e-2, rtol=2e-2), "continuous mu mismatch"
    assert jnp.allclose(var_c, var_ref, atol=3e-2, rtol=2e-2), "continuous var mismatch"

    print("KERNEL_OK")
</pallas_src>

<mosaic_0001>
module attributes {stable_mosaic.version = 11 : i64} {
  func.func @pg_actor_kernel(%arg0: i32, %arg1: memref<8x16xbf16, #tpu.memory_space<vmem>>, %arg2: memref<16x32xbf16, #tpu.memory_space<vmem>>, %arg3: memref<1x32xf32, #tpu.memory_space<vmem>>, %arg4: memref<32x32xbf16, #tpu.memory_space<vmem>>, %arg5: memref<1x32xf32, #tpu.memory_space<vmem>>, %arg6: memref<32x12xbf16, #tpu.memory_space<vmem>>, %arg7: memref<1x12xf32, #tpu.memory_space<vmem>>, %arg8: memref<8x12xf32, #tpu.memory_space<vmem>>) attributes {dimension_semantics = [#tpu.dimension_semantics<parallel>], iteration_bounds = array<i64: 1>, scalar_prefetch = 0 : i64, scratch_operands = 0 : i64, tpu.core_type = #tpu.core_type<tc>, window_params = [{transform_indices = @transform_0, window_bounds = array<i64: 8, 16>}, {pipeline_mode = #tpu.pipeline_mode<synchronous>, transform_indices = @transform_1, window_bounds = array<i64: 16, 32>}, {pipeline_mode = #tpu.pipeline_mode<synchronous>, transform_indices = @transform_2, window_bounds = array<i64: 1, 32>}, {pipeline_mode = #tpu.pipeline_mode<synchronous>, transform_indices = @transform_3, window_bounds = array<i64: 32, 32>}, {pipeline_mode = #tpu.pipeline_mode<synchronous>, transform_indices = @transform_4, window_bounds = array<i64: 1, 32>}, {pipeline_mode = #tpu.pipeline_mode<synchronous>, transform_indices = @transform_5, window_bounds = array<i64: 32, 12>}, {pipeline_mode = #tpu.pipeline_mode<synchronous>, transform_indices = @transform_6, window_bounds = array<i64: 1, 12>}, {transform_indices = @transform_7, window_bounds = array<i64: 8, 12>}]} {
    %c0 = arith.constant 0 : index
    %c0_0 = arith.constant 0 : index
    %0 = vector.load %arg1[%c0, %c0_0] : memref<8x16xbf16, #tpu.memory_space<vmem>>, vector<8x16xbf16>
    %c0_1 = arith.constant 0 : index
    %c0_2 = arith.constant 0 : index
    %1 = vector.load %arg2[%c0_1, %c0_2] : memref<16x32xbf16, #tpu.memory_space<vmem>>, vector<16x32xbf16>
    %cst = arith.constant dense<0.000000e+00> : vector<8x32xf32>
    %2 = tpu.matmul %0, %1, %cst {dimension_numbers = #tpu.dot_dimension_numbers<[1], [0], [0], [1], [0, 0, 1, 1], [], []>} : vector<8x16xbf16>, vector<16x32xbf16>, vector<8x32xf32> -> vector<8x32xf32>
    %c0_3 = arith.constant 0 : index
    %c0_4 = arith.constant 0 : index
    %3 = vector.load %arg3[%c0_3, %c0_4] : memref<1x32xf32, #tpu.memory_space<vmem>>, vector<1x32xf32>
    %4 = vector.broadcast %3 : vector<1x32xf32> to vector<8x32xf32>
    %5 = arith.addf %2, %4 : vector<8x32xf32>
    %cst_5 = arith.constant 0.000000e+00 : f32
    %6 = vector.broadcast %cst_5 : f32 to vector<8x32xf32>
    %7 = arith.maximumf %5, %6 : vector<8x32xf32>
    %8 = arith.truncf %7 : vector<8x32xf32> to vector<8x32xbf16>
    %c0_6 = arith.constant 0 : index
    %c0_7 = arith.constant 0 : index
    %9 = vector.load %arg4[%c0_6, %c0_7] : memref<32x32xbf16, #tpu.memory_space<vmem>>, vector<32x32xbf16>
    %cst_8 = arith.constant dense<0.000000e+00> : vector<8x32xf32>
    %10 = tpu.matmul %8, %9, %cst_8 {dimension_numbers = #tpu.dot_dimension_numbers<[1], [0], [0], [1], [0, 0, 1, 1], [], []>} : vector<8x32xbf16>, vector<32x32xbf16>, vector<8x32xf32> -> vector<8x32xf32>
    %c0_9 = arith.constant 0 : index
    %c0_10 = arith.constant 0 : index
    %11 = vector.load %arg5[%c0_9, %c0_10] : memref<1x32xf32, #tpu.memory_space<vmem>>, vector<1x32xf32>
    %12 = vector.broadcast %11 : vector<1x32xf32> to vector<8x32xf32>
    %13 = arith.addf %10, %12 : vector<8x32xf32>
    %cst_11 = arith.constant 0.000000e+00 : f32
    %14 = vector.broadcast %cst_11 : f32 to vector<8x32xf32>
    %15 = arith.maximumf %13, %14 : vector<8x32xf32>
    %16 = arith.truncf %15 : vector<8x32xf32> to vector<8x32xbf16>
    %c0_12 = arith.constant 0 : index
    %c0_13 = arith.constant 0 : index
    %17 = vector.load %arg6[%c0_12, %c0_13] : memref<32x12xbf16, #tpu.memory_space<vmem>>, vector<32x12xbf16>
    %cst_14 = arith.constant dense<0.000000e+00> : vector<8x12xf32>
    %18 = tpu.matmul %16, %17, %cst_14 {dimension_numbers = #tpu.dot_dimension_numbers<[1], [0], [0], [1], [0, 0, 1, 1], [], []>} : vector<8x32xbf16>, vector<32x12xbf16>, vector<8x12xf32> -> vector<8x12xf32>
    %c0_15 = arith.constant 0 : index
    %c0_16 = arith.constant 0 : index
    %19 = vector.load %arg7[%c0_15, %c0_16] : memref<1x12xf32, #tpu.memory_space<vmem>>, vector<1x12xf32>
    %20 = vector.broadcast %19 : vector<1x12xf32> to vector<8x12xf32>
    %21 = arith.addf %18, %20 : vector<8x12xf32>
    %22 = tpu.iota {dimensions = array<i32: 1>} : vector<8x12xi32>
    %c4_i32 = arith.constant 4 : i32
    %23 = vector.broadcast %c4_i32 : i32 to vector<8x12xi32>
    %24 = arith.cmpi sge, %22, %23 : vector<8x12xi32>
    %c8_i32 = arith.constant 8 : i32
    %25 = vector.broadcast %c8_i32 : i32 to vector<8x12xi32>
    %26 = arith.cmpi slt, %22, %25 : vector<8x12xi32>
    %27 = arith.andi %24, %26 : vector<8x12xi1>
    %c8_i32_17 = arith.constant 8 : i32
    %28 = vector.broadcast %c8_i32_17 : i32 to vector<8x12xi32>
    %29 = arith.cmpi sge, %22, %28 : vector<8x12xi32>
    %cst_18 = arith.constant 0.000000e+00 : f32
    %30 = vector.broadcast %cst_18 : f32 to vector<8x12xf32>
    %31 = arith.maximumf %21, %30 : vector<8x12xf32>
    %32 = math.absf %21 : vector<8x12xf32>
    %cst_19 = arith.constant 0.000000e+00 : f32
    %33 = vector.broadcast %cst_19 : f32 to vector<8x12xf32>
    %34 = arith.subf %33, %32 : vector<8x12xf32>
    %35 = math.exp %34 : vector<8x12xf32>
    %36 = math.log1p %35 : vector<8x12xf32>
    %37 = arith.addf %31, %36 : vector<8x12xf32>
    %38 = math.tanh %21 : vector<8x12xf32>
    %39 = arith.select %29, %37, %21 : vector<8x12xi1>, vector<8x12xf32>
    %40 = arith.select %27, %38, %39 : vector<8x12xi1>, vector<8x12xf32>
    %c0_20 = arith.constant 0 : index
    %c0_21 = arith.constant 0 : index
    %41 = vector.load %arg8[%c0_20, %c0_21] : memref<8x12xf32, #tpu.memory_space<vmem>>, vector<8x12xf32>
    tpu.vector_store %arg8[%c0_20, %c0_21], %40 {strides = array<i32>} : memref<8x12xf32, #tpu.memory_space<vmem>>, vector<8x12xf32>,
    return
  }
  func.func @transform_0(%arg0: i32) -> (i32, i32) {
    %c0_i32 = arith.constant 0 : i32
    %c0_i32_0 = arith.constant 0 : i32
    return %arg0, %c0_i32 : i32, i32
  }
  func.func @transform_1(%arg0: i32) -> (i32, i32) {
    %c0_i32 = arith.constant 0 : i32
    %c0_i32_0 = arith.constant 0 : i32
    %c0_i32_1 = arith.constant 0 : i32
    return %c0_i32, %c0_i32_0 : i32, i32
  }
  func.func @transform_2(%arg0: i32) -> (i32, i32) {
    %c0_i32 = arith.constant 0 : i32
    %c0_i32_0 = arith.constant 0 : i32
    %c0_i32_1 = arith.constant 0 : i32
    return %c0_i32, %c0_i32_0 : i32, i32
  }
  func.func @transform_3(%arg0: i32) -> (i32, i32) {
    %c0_i32 = arith.constant 0 : i32
    %c0_i32_0 = arith.constant 0 : i32
    %c0_i32_1 = arith.constant 0 : i32
    return %c0_i32, %c0_i32_0 : i32, i32
  }
  func.func @transform_4(%arg0: i32) -> (i32, i32) {
    %c0_i32 = arith.constant 0 : i32
    %c0_i32_0 = arith.constant 0 : i32
    %c0_i32_1 = arith.constant 0 : i32
    return %c0_i32, %c0_i32_0 : i32, i32
  }
  func.func @transform_5(%arg0: i32) -> (i32, i32) {
    %c0_i32 = arith.constant 0 : i32
    %c0_i32_0 = arith.constant 0 : i32
    %c0_i32_1 = arith.constant 0 : i32
    return %c0_i32, %c0_i32_0 : i32, i32
  }
  func.func @transform_6(%arg0: i32) -> (i32, i32) {
    %c0_i32 = arith.constant 0 : i32
    %c0_i32_0 = arith.constant 0 : i32
    %c0_i32_1 = arith.constant 0 : i32
    return %c0_i32, %c0_i32_0 : i32, i32
  }
  func.func @transform_7(%arg0: i32) -> (i32, i32) {
    %c0_i32 = arith.constant 0 : i32
    %c0_i32_0 = arith.constant 0 : i32
    return %arg0, %c0_i32 : i32, i32
  }
}

</mosaic_0001>

<llo_original>
// kernel: tpu_custom_call.1
$region0: #{tpu_custom_call.1}
  #allocation0 [shape = 'u32[]', space=smem, size = 0x4, offset = 0x4, fixed_abs, tag = 'smem constant byte address 0x4 - core index']
  #allocation1 [shape = 'u32[144,128]{1,0:T(1,128)}', space=vmem, size = 0x12000, scoped, tag = 'internal scratch']
  %s0 = inlined_call_operand.hbm [shape: bf16[8,16], index: 0, kind: input, shape index: {}]
  %s1 = inlined_call_operand.vmem [shape: bf16[16,32], index: 1, kind: input, shape index: {}]
  %s2 = inlined_call_operand.vmem [shape: f32[1,32], index: 2, kind: input, shape index: {}]
  %s3 = inlined_call_operand.vmem [shape: bf16[32,32], index: 3, kind: input, shape index: {}]
  %s4 = inlined_call_operand.hbm [shape: f32[1,32], index: 4, kind: input, shape index: {}]
  %s5 = inlined_call_operand.vmem [shape: bf16[32,12], index: 5, kind: input, shape index: {}]
  %s6 = inlined_call_operand.vmem [shape: f32[1,12], index: 6, kind: input, shape index: {}]
  %s7 = inlined_call_operand.hbm [shape: f32[8,12], index: 7, kind: output, shape index: {}]
  %s8 = sld [smem:[#allocation0]]
  $region46: #{tpu_custom_call.1} parent=0
    _
  %s10 = ssub.s32 1, %s8
  %s11 = scalar_select 0, %s10, %s8
  $region1: #{tpu_custom_call.1} parent=0
    #allocation2 [shape = 'u8[2048]{0}', space=vmem, size = 0x800, scoped, tag = 'input window, operand 0, single buffered']
    #allocation3 [shape = 's32[1]{0}', space=sflag, size = 0x4, scoped, tag = 'scoped memory for tpu_custom_call.1']
    #allocation4 [shape = 's32[1]{0}', space=sflag, size = 0x4, scoped, tag = 'scoped memory for tpu_custom_call.1']
    #allocation5 [shape = 'u8[512]{0}', space=vmem, size = 0x400, scoped, tag = 'input window, operand 4, single buffered']
    #allocation6 [shape = 's32[1]{0}', space=sflag, size = 0x4, scoped, tag = 'scoped memory for tpu_custom_call.1']
    #allocation7 [shape = 'u8[4096]{0}', space=vmem, size = 0x1000, scoped, tag = 'output window, operand 0, single buffered']
    %12 = vsyncpa [#allocation3], 0
    %13 = vsyncpa [#allocation6], 0
    %14 = vsyncpa [#allocation4], 0
    // Predicated region
    $region2: #{tpu_custom_call.1} parent=1 // pred_check
      _
    $region3: #{tpu_custom_call.1} parent=1 // pred_check_branch
      %16 = sbr.rel (0) target = $region5
    $region4: #{tpu_custom_call.1} parent=1 // pred_region
      %s18 = ssub.s32 64, 64
      %19 = vsyncadd [#allocation3], %s18
      %s21 = sshll.u32 [#allocation2], 4
      %s22 = int_to_ptr.vmem [resolvable:$true] %s21
      %24 = dma.hbm_to_vmem [thread:$0]  %s0, 64, %s22, [#allocation3]
    $region5: #{tpu_custom_call.1} parent=1 // pred_fallthru
      _
    // Predicated region
    $region6: #{tpu_custom_call.1} parent=1 // pred_check
      _
    $region7: #{tpu_custom_call.1} parent=1 // pred_check_branch
      %26 = sbr.rel (0) target = $region9
    $region8: #{tpu_custom_call.1} parent=1 // pred_region
      _
    $region9: #{tpu_custom_call.1} parent=1 // pred_fallthru
      _
    // Predicated region
    $region10: #{tpu_custom_call.1} parent=1 // pred_check
      _
    $region11: #{tpu_custom_call.1} parent=1 // pred_check_branch
      %28 = sbr.rel (0) target = $region13
    $region12: #{tpu_custom_call.1} parent=1 // pred_region
      _
    $region13: #{tpu_custom_call.1} parent=1 // pred_fallthru
      _
    // Predicated region
    $region14: #{tpu_custom_call.1} parent=1 // pred_check
      _
    $region15: #{tpu_custom_call.1} parent=1 // pred_check_branch
      %30 = sbr.rel (0) target = $region17
    $region16: #{tpu_custom_call.1} parent=1 // pred_region
      _
    $region17: #{tpu_custom_call.1} parent=1 // pred_fallthru
      _
    // Predicated region
    $region18: #{tpu_custom_call.1} parent=1 // pred_check
      _
    $region19: #{tpu_custom_call.1} parent=1 // pred_check_branch
      %32 = sbr.rel (0) target = $region21
    $region20: #{tpu_custom_call.1} parent=1 // pred_region
      %s34 = ssub.s32 16, 16
      %35 = vsyncadd [#allocation6], %s34
      %s37 = sshll.u32 [#allocation5], 4
      %s38 = int_to_ptr.vmem [resolvable:$true] %s37
      %40 = dma.hbm_to_vmem [thread:$0]  %s4, 16, %s38, [#allocation6]
    $region21: #{tpu_custom_call.1} parent=1 // pred_fallthru
      _
    // Predicated region
    $region22: #{tpu_custom_call.1} parent=1 // pred_check
      _
    $region23: #{tpu_custom_call.1} parent=1 // pred_check_branch
      %42 = sbr.rel (0) target = $region25
    $region24: #{tpu_custom_call.1} parent=1 // pred_region
      _
    $region25: #{tpu_custom_call.1} parent=1 // pred_fallthru
      _
    // Predicated region
    $region26: #{tpu_custom_call.1} parent=1 // pred_check
      _
    $region27: #{tpu_custom_call.1} parent=1 // pred_check_branch
      %44 = sbr.rel (0) target = $region29
    $region28: #{tpu_custom_call.1} parent=1 // pred_region
      _
    $region29: #{tpu_custom_call.1} parent=1 // pred_fallthru
      _
    // Predicated region
    $region30: #{tpu_custom_call.1} parent=1 // pred_check
      _
    $region31: #{tpu_custom_call.1} parent=1 // pred_check_branch
      %46 = sbr.rel (0) target = $region33
    $region32: #{tpu_custom_call.1} parent=1 // pred_region
      %47 = dma.done [#allocation3], 64
    $region33: #{tpu_custom_call.1} parent=1 // pred_fallthru
      _
    // Predicated region
    $region34: #{tpu_custom_call.1} parent=1 // pred_check
      _
    $region35: #{tpu_custom_call.1} parent=1 // pred_check_branch
      %49 = sbr.rel (0) target = $region37
    $region36: #{tpu_custom_call.1} parent=1 // pred_region
      %50 = dma.done [#allocation6], 16
    $region37: #{tpu_custom_call.1} parent=1 // pred_fallthru
      _
    %v52 = vld [vmem:[#allocation2] sm:$0xf]
    %v53 = vld [vmem:[%s1] sm:$0xf]
    %v54 = vld [vmem:[%s1 + $0x4] sm:$0xf]
    %v55 = vld [vmem:[%s2] sm:$0x1]
    %v57 = vlaneseq
    %v58 = vshrl.u32 %v57, 7
    %v59 = vsub.s32 0, %v58
    %v60 = vrot.slane %v55, %v59
    %v64 = vunpack.c.l.b16 %v53
    %v65 = vunpack.c.l.b16 %v54
    %v66 = vpack.c.b16 %v65, %v64
    %vm68 = vcmask 130048
    %v70 = vsel %vm68, %v52, 0
    %72 = vmatprep.subr.bf16.mxu0 0
    %73 = vmatpush1.bf16.msra.mxu0 0
    %74 = vmatprep.subr.bf16.mxu0 0
    %75 = vmatpush1.bf16.msra.mxu0 0
    %76 = vmatprep.subr.bf16.mxu0 0
    %77 = vmatpush1.bf16.msra.mxu0 0
    %78 = vmatprep.subr.bf16.mxu0 0
    %79 = vmatpush1.bf16.msra.mxu0 0
    %80 = vmatprep.subr.bf16.mxu0 0
    %81 = vmatpush1.bf16.msra.mxu0 0
    %82 = vmatprep.subr.bf16.mxu0 0
    %83 = vmatpush1.bf16.msra.mxu0 0
    %84 = vmatprep.subr.bf16.mxu0 0
    %85 = vmatpush1.bf16.msra.mxu0 0
    %86 = vmatprep.subr.bf16.mxu0 0
    %87 = vmatpush1.bf16.msra.mxu0 %v66
    %88 = vmatprep.subr.bf16.mxu0 0
    %89 = vmatpush2.bf16.msra.mxu0 0
    %90 = vmatprep.subr.bf16.mxu0 0
    %91 = vmatpush2.bf16.msra.mxu0 0
    %92 = vmatprep.subr.bf16.mxu0 0
    %93 = vmatpush2.bf16.msra.mxu0 0
    %94 = vmatprep.subr.bf16.mxu0 0
    %95 = vmatpush2.bf16.msra.mxu0 0
    %96 = vmatprep.subr.bf16.mxu0 0
    %97 = vmatpush2.bf16.msra.mxu0 0
    %98 = vmatprep.subr.bf16.mxu0 0
    %99 = vmatpush2.bf16.msra.mxu0 0
    %100 = vmatprep.subr.bf16.mxu0 0
    %101 = vmatpush2.bf16.msra.mxu0 0
    %102 = vmatprep.subr.bf16.mxu0 0
    %103 = vmatpush2.bf16.msra.mxu0 0
    %104 = vmatprep.mubr.bf16.mxu0 0
    %105 = vmatmul.mubr.bf16.gmra.mxu0 %v70
    %v106 = vpop.f32.mrf.mxu0
    %v107 = vadd.f32 %v60, %v106
    %v108 = vpop.f32.mrf.mxu0
    %v109 = vpop.f32.mrf.mxu0
    %v110 = vpop.f32.mrf.mxu0
    %111 = vdwg.mxu0
    %v112 = vmax.f32 %v107, 0.0
    %v113 = vpack.c.bf16 %v112, %v112
    %v114 = vld [vmem:[%s3] sm:$0xf]
    %v115 = vld [vmem:[%s3 + $0x4] sm:$0xf]
    %v116 = vld [vmem:[%s3 + $0x8] sm:$0xf]
    %v117 = vld [vmem:[%s3 + $0xc] sm:$0xf]
    %v118 = vld [vmem:[#allocation5] sm:$0x1]
    %v120 = vlaneseq
    %v121 = vshrl.u32 %v120, 7
    %v122 = vsub.s32 0, %v121
    %v123 = vrot.slane %v118, %v122
    %v129 = vunpack.c.l.b16 %v114
    %v130 = vunpack.c.l.b16 %v115
    %v131 = vunpack.c.l.b16 %v116
    %v132 = vunpack.c.l.b16 %v117
    %v133 = vpack.c.b16 %v130, %v129
    %v134 = vpack.c.b16 %v132, %v131
    %vm137 = vcmask 261120
    %v139 = vsel %vm137, %v113, 0
    %141 = vmatprep.subr.bf16.mxu0 0
    %142 = vmatpush1.bf16.msra.mxu0 0
    %143 = vmatprep.subr.bf16.mxu0 0
    %144 = vmatpush1.bf16.msra.mxu0 0
    %145 = vmatprep.subr.bf16.mxu0 0
    %146 = vmatpush1.bf16.msra.mxu0 0
    %147 = vmatprep.subr.bf16.mxu0 0
    %148 = vmatpush1.bf16.msra.mxu0 0
    %149 = vmatprep.subr.bf16.mxu0 0
    %150 = vmatpush1.bf16.msra.mxu0 0
    %151 = vmatprep.subr.bf16.mxu0 0
    %152 = vmatpush1.bf16.msra.mxu0 0
    %153 = vmatprep.subr.bf16.mxu0 0
    %154 = vmatpush1.bf16.msra.mxu0 %v134
    %155 = vmatprep.subr.bf16.mxu0 0
    %156 = vmatpush1.bf16.msra.mxu0 %v133
    %157 = vmatprep.subr.bf16.mxu0 0
    %158 = vmatpush2.bf16.msra.mxu0 0
    %159 = vmatprep.subr.bf16.mxu0 0
    %160 = vmatpush2.bf16.msra.mxu0 0
    %161 = vmatprep.subr.bf16.mxu0 0
    %162 = vmatpush2.bf16.msra.mxu0 0
    %163 = vmatprep.subr.bf16.mxu0 0
    %164 = vmatpush2.bf16.msra.mxu0 0
    %165 = vmatprep.subr.bf16.mxu0 0
    %166 = vmatpush2.bf16.msra.mxu0 0
    %167 = vmatprep.subr.bf16.mxu0 0
    %168 = vmatpush2.bf16.msra.mxu0 0
    %169 = vmatprep.subr.bf16.mxu0 0
    %170 = vmatpush2.bf16.msra.mxu0 0
    %171 = vmatprep.subr.bf16.mxu0 0
    %172 = vmatpush2.bf16.msra.mxu0 0
    %173 = vmatprep.mubr.bf16.mxu0 0
    %174 = vmatmul.mubr.bf16.gmra.mxu0 %v139
    %v175 = vpop.f32.mrf.mxu0
    %v176 = vadd.f32 %v123, %v175
    %v177 = vpop.f32.mrf.mxu0
    %v178 = vpop.f32.mrf.mxu0
    %v179 = vpop.f32.mrf.mxu0
    %180 = vdwg.mxu0
    %v181 = vmax.f32 %v176, 0.0
    %v182 = vpack.c.bf16 %v181, %v181
    %v183 = vld [vmem:[%s5] sm:$0xf]
    %v184 = vld [vmem:[%s5 + $0x4] sm:$0xf]
    %v185 = vld [vmem:[%s5 + $0x8] sm:$0xf]
    %v186 = vld [vmem:[%s5 + $0xc] sm:$0xf]
    %v187 = vld [vmem:[%s6] sm:$0x1]
    %v189 = vlaneseq
    %v190 = vshrl.u32 %v189, 7
    %v191 = vsub.s32 0, %v190
    %v192 = vrot.slane %v187, %v191
    %v198 = vunpack.c.l.b16 %v183
    %v199 = vunpack.c.l.b16 %v184
    %v200 = vunpack.c.l.b16 %v185
    %v201 = vunpack.c.l.b16 %v186
    %v202 = vpack.c.b16 %v199, %v198
    %v203 = vpack.c.b16 %v201, %v200
    %v207 = vsel %vm137, %v182, 0
    %209 = vmatprep.subr.bf16.mxu0 0
    %210 = vmatpush1.bf16.msra.mxu0 0
    %211 = vmatprep.subr.bf16.mxu0 0
    %212 = vmatpush1.bf16.msra.mxu0 0
    %213 = vmatprep.subr.bf16.mxu0 0
    %214 = vmatpush1.bf16.msra.mxu0 0
    %215 = vmatprep.subr.bf16.mxu0 0
    %216 = vmatpush1.bf16.msra.mxu0 0
    %217 = vmatprep.subr.bf16.mxu0 0
    %218 = vmatpush1.bf16.msra.mxu0 0
    %219 = vmatprep.subr.bf16.mxu0 0
    %220 = vmatpush1.bf16.msra.mxu0 0
    %221 = vmatprep.subr.bf16.mxu0 0
    %222 = vmatpush1.bf16.msra.mxu0 %v203
    %223 = vmatprep.subr.bf16.mxu0 0
    %224 = vmatpush1.bf16.msra.mxu0 %v202
    %225 = vmatprep.subr.bf16.mxu0 0
    %226 = vmatpush2.bf16.msra.mxu0 0
    %227 = vmatprep.subr.bf16.mxu0 0
    %228 = vmatpush2.bf16.msra.mxu0 0
    %229 = vmatprep.subr.bf16.mxu0 0
    %230 = vmatpush2.bf16.msra.mxu0 0
    %231 = vmatprep.subr.bf16.mxu0 0
    %232 = vmatpush2.bf16.msra.mxu0 0
    %233 = vmatprep.subr.bf16.mxu0 0
    %234 = vmatpush2.bf16.msra.mxu0 0
    %235 = vmatprep.subr.bf16.mxu0 0
    %236 = vmatpush2.bf16.msra.mxu0 0
    %237 = vmatprep.subr.bf16.mxu0 0
    %238 = vmatpush2.bf16.msra.mxu0 0
    %239 = vmatprep.subr.bf16.mxu0 0
    %240 = vmatpush2.bf16.msra.mxu0 0
    %241 = vmatprep.mubr.bf16.mxu0 0
    %242 = vmatmul.mubr.bf16.gmra.mxu0 %v207
    %v243 = vpop.f32.mrf.mxu0
    %v244 = vadd.f32 %v192, %v243
    %v245 = vpop.f32.mrf.mxu0
    %v246 = vpop.f32.mrf.mxu0
    %v247 = vpop.f32.mrf.mxu0
    %248 = vdwg.mxu0
    %v249 = vlaneseq
    %v250 = vand.u32 %v249, 127
    %vm251 = vcmp.ge.s32.totalorder %v250, 4
    %vm252 = vcmp.lt.s32.totalorder %v250, 8
    %vm253 = vmand %vm251, %vm252
    %vm254 = vcmp.ge.s32.totalorder %v250, 8
    %v255 = vmax.f32 %v244, 0.0
    %v256 = vand.u32 2147483647, %v244
    %v257 = vsub.f32 0.0, %v256
    %v258 = vmul.f32 %v257, 1.442695
    %v259 = vpow.pop %v258
    %v260 = vadd.f32 %v259, 1.0
    %v261 = vlog2.pop %v260
    %v262 = vmul.f32 %v261, 0.6931472
    %v263 = vmul.f32 -0.5, %v259
    %v264 = vadd.f32 %v263, 1.0
    %v265 = vmul.f32 %v264, %v259
    %v266 = vand.u32 2147483647, %v259
    %vm267 = vcmp.lt.f32.partialorder %v266, 0.0004427343
    %v268 = vsel %vm267, %v265, %v262
    %v269 = vadd.f32 %v255, %v268
    %v270 = vtanh.pop %v244
    %v271 = vsel %vm254, %v269, %v244
    %v272 = vsel %vm253, %v270, %v271
    %vm273 = vcmask 97280
    %274 = vst.msk [vmem:[#allocation7] sm:$0xff] %vm273, %v272
    // Predicated region
    $region38: #{tpu_custom_call.1} parent=1 // pred_check
      _
    $region39: #{tpu_custom_call.1} parent=1 // pred_check_branch
      %276 = sbr.rel (0) target = $region41
    $region40: #{tpu_custom_call.1} parent=1 // pred_region
      %s278 = ssub.s32 128, 128
      %279 = vsyncadd [#allocation4], %s278
      %s281 = sshll.u32 [#allocation7], 4
      %s282 = int_to_ptr.vmem [resolvable:$true] %s281
      %284 = dma.vmem_to_hbm [thread:$0]  %s282, 128, %s7, [#allocation4]
    $region41: #{tpu_custom_call.1} parent=1 // pred_fallthru
      _
    // Predicated region
    $region42: #{tpu_custom_call.1} parent=1 // pred_check
      _
    $region43: #{tpu_custom_call.1} parent=1 // pred_check_branch
      %286 = sbr.rel (0) target = $region45
    $region44: #{tpu_custom_call.1} parent=1 // pred_region
      %287 = dma.done [#allocation4], 128
    $region45: #{tpu_custom_call.1} parent=1 // pred_fallthru
      _
    %288 = vsyncpa [#allocation3], 1
    %289 = vsyncpa [#allocation6], 1
    %290 = vsyncpa [#allocation4], 1

</llo_original>
